<compile_context>
chip_gen: v6e
topology: v6e:2x2x1
jax: 0.10.0
libtpu: 0.0.40
codegen_flags: <defaults>
</compile_context>

<pallas_src>
import numpy as np
import jax
import jax.numpy as jnp
from jax.experimental import pallas as pl
from jax.experimental.pallas import tpu as pltpu

EPS = 1e-7
NC = 256          # self.nc in the module (PatchSampleF default)
INIT_GAIN = 0.02  # init_type='normal', init_gain=0.02


def _round_up(v, m):
    return -(-v // m) * m


def _tpu_cores_and_vmem():
    """(num TensorCores sharing the grid, per-core VMEM capacity in bytes)."""
    cores, vmem_cap = 1, 128 << 20
    try:
        info = pltpu.get_tpu_info()
        vmem_cap = int(getattr(info, "vmem_capacity_bytes", vmem_cap))
    except Exception:
        pass
    try:
        dk = jax.devices()[0].device_kind.lower()
        if ("v7" in dk) or ("7x" in dk) or ("v4" in dk) or ("v5p" in dk):
            cores = 2          # megacore / dual-TC parts shard "parallel" grid axes
    except Exception:
        pass
    return cores, vmem_cap


# ---------------------------------------------------------------------------
# Pallas kernel: fused  (x @ W1 + b1) -> relu -> (@ W2 + b2) -> l2norm(dim=-1)
# x / W1 / W2 are bf16 (MXU-native), accumulation + VPU/EUP math in f32.
# ---------------------------------------------------------------------------
def _mlp_l2norm_kernel(x_ref, w1_ref, b1_ref, w2_ref, b2_ref, o_ref):
    x = x_ref[...]                                                    # bf16
    h = jnp.dot(x, w1_ref[...], preferred_element_type=jnp.float32)  # f32 acc
    h = jnp.maximum(h + b1_ref[...], 0.0)                            # f32 bias + ReLU
    y = jnp.dot(h.astype(w2_ref.dtype), w2_ref[...],
                preferred_element_type=jnp.float32) + b2_ref[...]
    # Normalize(power=2): out = y / (sqrt(sum(y^2, -1)) + 1e-7)
    norm = jnp.sqrt(jnp.sum(y * y, axis=-1, keepdims=True))
    inv = pl.reciprocal(norm + EPS, approx=True)                      # EUP slot
    o_ref[...] = (y * inv).astype(o_ref.dtype)


def mlp_l2norm(x, w1, b1, w2, b2, max_tn=4096):
    """x: (N, C_in) bf16 -> (N, nc) f32, computed by the fused Pallas kernel."""
    n, cin = x.shape
    ncf = w1.shape[1]
    bpe_x = jnp.dtype(x.dtype).itemsize
    bpe_w = jnp.dtype(w1.dtype).itemsize
    cores, vmem_cap = _tpu_cores_and_vmem()

    # --- VMEM accounting (true bytes, no double counting) --------------------
    # Resident weights/biases (constant index_map) still get the default 2 buffers.
    weight_bytes = 2 * (cin * ncf * bpe_w + ncf * ncf * bpe_w) + 2 * 2 * ncf * 4
    # Per row: double-buffered x tile + double-buffered f32 out tile + f32 temps
    # (h, y) + the bf16 copy of h fed to the second matmul.
    per_row = 2 * cin * bpe_x + 2 * ncf * 4 + 2 * ncf * 4 + ncf * 2

    budget = min(24 << 20, vmem_cap // 2)          # tile budget, safe on 64 MiB/TC v7x
    cap = max(16, ((budget - weight_bytes) // per_row) // 16 * 16)

    # --- row-tile selection ---------------------------------------------------
    if cores > 1 and n > 16:
        # one block per TensorCore when it fits (grid == cores for typical CUT sizes)
        tn = min(max_tn, cap, max(16, _round_up(pl.cdiv(n, cores), 16)))
    else:
        # single-TC parts: one block when the whole N fits the budget
        tn = min(max_tn, cap, max(16, _round_up(n, 16)))
    grid = pl.cdiv(n, tn)                          # no host-side pad; ragged tail OK
    # (ragged last block reads undefined rows, but math is row-wise independent and
    #  out-of-bounds rows are never written back)

    vmem_need = weight_bytes + tn * per_row + (2 << 20)      # + compiler scratch slack
    vmem_limit = int(min(max(vmem_need, 16 << 20), max(vmem_cap // 2, 16 << 20)))

    return pl.pallas_call(
        _mlp_l2norm_kernel,
        out_shape=jax.ShapeDtypeStruct((n, ncf), jnp.float32),
        grid_spec=pltpu.PrefetchScalarGridSpec(
            num_scalar_prefetch=0,
            grid=(grid,),
            in_specs=[
                pl.BlockSpec((tn, cin), lambda i: (i, 0)),    # x rows (streamed, bf16)
                pl.BlockSpec((cin, ncf), lambda i: (0, 0)),   # W1 (resident, bf16)
                pl.BlockSpec((1, ncf), lambda i: (0, 0)),     # b1 (f32)
                pl.BlockSpec((ncf, ncf), lambda i: (0, 0)),   # W2 (resident, bf16)
                pl.BlockSpec((1, ncf), lambda i: (0, 0)),     # b2 (f32)
            ],
            out_specs=pl.BlockSpec((tn, ncf), lambda i: (i, 0)),
        ),
        compiler_params=pltpu.CompilerParams(
            dimension_semantics=("parallel",),
            vmem_limit_bytes=vmem_limit,
        ),
    )(x, w1, b1, w2, b2)


# ---------------------------------------------------------------------------
# Per-layer pipeline: gather (still NCHW) -> small transpose -> bf16 cast ->
# fused MLP kernel.  jitted once per (shape, dtype) signature (jax.jit caches),
# so the per-layer Python loop does not re-trace on subsequent calls.
# ---------------------------------------------------------------------------
@jax.jit
def _sample_and_project(feat, patch_id, w1, b1, w2, b2):
    B, C, H, W = feat.shape
    feat_flat = feat.reshape(B, C, H * W)               # NCHW, flattened spatial
    x = jnp.take(feat_flat, patch_id, axis=2)           # (B, C, P)  -- gather first
    x = jnp.transpose(x, (0, 2, 1)).reshape(-1, C)      # (B*P, C), channels on lanes
    x = x.astype(jnp.bfloat16)                          # bf16 operands for the MXU
    return mlp_l2norm(x, w1, b1, w2, b2)


# ---------------------------------------------------------------------------
# Parameter init (mirrors create_mlp: Linear(C_in,nc)+ReLU+Linear(nc,nc),
# 'normal' init with gain 0.02, zero bias).  Weights stored bf16, biases f32.
# ---------------------------------------------------------------------------
def init_mlp_params(key, input_nc, nc=NC, init_gain=INIT_GAIN):
    k1, k2 = jax.random.split(key)
    w1 = (jax.random.normal(k1, (input_nc, nc), jnp.float32) * init_gain).astype(jnp.bfloat16)
    b1 = jnp.zeros((1, nc), jnp.float32)
    w2 = (jax.random.normal(k2, (nc, nc), jnp.float32) * init_gain).astype(jnp.bfloat16)
    b2 = jnp.zeros((1, nc), jnp.float32)
    return (w1, b1, w2, b2)


# ---------------------------------------------------------------------------
# PatchSampleF.forward (use_mlp=True path, num_patches > 0)
# ---------------------------------------------------------------------------
def patch_sample_f_forward(feats, mlps, num_patches=256, patch_ids=None, rng=None):
    return_ids, return_feats = [], []
    for feat_id, feat in enumerate(feats):
        B, C, H, W = feat.shape
        if num_patches > 0:
            if patch_ids is not None:
                pid_np = np.asarray(patch_ids[feat_id])
                if pid_np.size and (pid_np.min() < 0 or pid_np.max() >= H * W):
                    raise IndexError(f"patch_ids[{feat_id}] out of range for H*W={H * W}")
                patch_id = jnp.asarray(pid_np, jnp.int32)
            else:
                rng, sub = jax.random.split(rng)
                perm = jax.random.permutation(sub, H * W)
                patch_id = perm[: int(min(num_patches, H * W))].astype(jnp.int32)
        else:
            # TODO(synk): num_patches == 0 path (full-map MLP + normalize over dim 1 and
            # reshape back to NCHW) not exercised here; kernel handles the sampled path.
            raise NotImplementedError("num_patches == 0 path not implemented")
        w1, b1, w2, b2 = mlps[feat_id]
        y = _sample_and_project(feat, patch_id, w1, b1, w2, b2)
        return_ids.append(patch_id)
        return_feats.append(y)
    return return_feats, return_ids


# ---------------------------------------------------------------------------
# Pure-JAX reference mirroring the kernel's numerics (bf16 operands, f32 accum,
# PyTorch NHWC-gather ordering) for correctness checking.
# ---------------------------------------------------------------------------
def _ref_mlp_l2norm(x_bf16, w1, b1, w2, b2):
    x = x_bf16.astype(jnp.float32)
    h = jnp.maximum(x @ w1.astype(jnp.float32) + b1, 0.0)
    h = h.astype(jnp.bfloat16).astype(jnp.float32)
    y = h @ w2.astype(jnp.float32) + b2
    norm = jnp.sqrt(jnp.sum(y * y, axis=1, keepdims=True))
    return y / (norm + EPS)


if __name__ == "__main__":
    key = jax.random.PRNGKey(0)
    k_f1, k_f2, k_m1, k_m2, k_perm = jax.random.split(key, 5)

    B = 2
    # two feature maps from different encoder layers (NCHW), small synthetic shapes
    feats = [
        jax.random.normal(k_f1, (B, 4, 16, 16), jnp.float32),
        jax.random.normal(k_f2, (B, 8, 8, 8), jnp.float32),
    ]
    mlps = [init_mlp_params(k_m1, 4), init_mlp_params(k_m2, 8)]

    num_patches = 64
    out_feats, out_ids = patch_sample_f_forward(
        feats, mlps, num_patches=num_patches, patch_ids=None, rng=k_perm
    )
    for y in out_feats:
        jax.block_until_ready(y)

    # correctness check vs pure-JAX reference following PyTorch's NHWC-gather ordering
    for feat, params, pid, y in zip(feats, mlps, out_ids, out_feats):
        Bc, Cc, Hc, Wc = feat.shape
        fr = jnp.transpose(feat, (0, 2, 3, 1)).reshape(Bc, Hc * Wc, Cc)
        xs = fr[:, pid, :].reshape(-1, Cc).astype(jnp.bfloat16)
        ref = _ref_mlp_l2norm(xs, *params)
        assert y.shape == (Bc * min(num_patches, Hc * Wc), NC)
        np.testing.assert_allclose(np.asarray(y), np.asarray(ref), rtol=1e-2, atol=2e-3)

    print("KERNEL_OK")
</pallas_src>

<mosaic_0001>
module attributes {stable_mosaic.version = 11 : i64} {
  func.func @_mlp_l2norm_kernel(%arg0: i32, %arg1: memref<128x4xbf16, #tpu.memory_space<vmem>>, %arg2: memref<4x256xbf16, #tpu.memory_space<vmem>>, %arg3: memref<1x256xf32, #tpu.memory_space<vmem>>, %arg4: memref<256x256xbf16, #tpu.memory_space<vmem>>, %arg5: memref<1x256xf32, #tpu.memory_space<vmem>>, %arg6: memref<128x256xf32, #tpu.memory_space<vmem>>) attributes {dimension_semantics = [#tpu.dimension_semantics<parallel>], iteration_bounds = array<i64: 1>, scalar_prefetch = 0 : i64, scratch_operands = 0 : i64, tpu.core_type = #tpu.core_type<tc>, window_params = [{transform_indices = @transform_0, window_bounds = array<i64: 128, 4>}, {pipeline_mode = #tpu.pipeline_mode<synchronous>, transform_indices = @transform_1, window_bounds = array<i64: 4, 256>}, {pipeline_mode = #tpu.pipeline_mode<synchronous>, transform_indices = @transform_2, window_bounds = array<i64: 1, 256>}, {pipeline_mode = #tpu.pipeline_mode<synchronous>, transform_indices = @transform_3, window_bounds = array<i64: 256, 256>}, {pipeline_mode = #tpu.pipeline_mode<synchronous>, transform_indices = @transform_4, window_bounds = array<i64: 1, 256>}, {transform_indices = @transform_5, window_bounds = array<i64: 128, 256>}]} {
    %c0 = arith.constant 0 : index
    %c0_0 = arith.constant 0 : index
    %0 = vector.load %arg1[%c0, %c0_0] : memref<128x4xbf16, #tpu.memory_space<vmem>>, vector<128x4xbf16>
    %c0_1 = arith.constant 0 : index
    %c0_2 = arith.constant 0 : index
    %1 = vector.load %arg2[%c0_1, %c0_2] : memref<4x256xbf16, #tpu.memory_space<vmem>>, vector<4x256xbf16>
    %cst = arith.constant dense<0.000000e+00> : vector<128x256xf32>
    %2 = tpu.matmul %0, %1, %cst {dimension_numbers = #tpu.dot_dimension_numbers<[1], [0], [0], [1], [0, 0, 1, 1], [], []>} : vector<128x4xbf16>, vector<4x256xbf16>, vector<128x256xf32> -> vector<128x256xf32>
    %c0_3 = arith.constant 0 : index
    %c0_4 = arith.constant 0 : index
    %3 = vector.load %arg3[%c0_3, %c0_4] : memref<1x256xf32, #tpu.memory_space<vmem>>, vector<1x256xf32>
    %4 = vector.broadcast %3 : vector<1x256xf32> to vector<128x256xf32>
    %5 = arith.addf %2, %4 : vector<128x256xf32>
    %cst_5 = arith.constant 0.000000e+00 : f32
    %6 = vector.broadcast %cst_5 : f32 to vector<128x256xf32>
    %7 = arith.maximumf %5, %6 : vector<128x256xf32>
    %8 = arith.truncf %7 : vector<128x256xf32> to vector<128x256xbf16>
    %c0_6 = arith.constant 0 : index
    %c0_7 = arith.constant 0 : index
    %9 = vector.load %arg4[%c0_6, %c0_7] : memref<256x256xbf16, #tpu.memory_space<vmem>>, vector<256x256xbf16>
    %cst_8 = arith.constant dense<0.000000e+00> : vector<128x256xf32>
    %10 = tpu.matmul %8, %9, %cst_8 {dimension_numbers = #tpu.dot_dimension_numbers<[1], [0], [0], [1], [0, 0, 1, 1], [], []>} : vector<128x256xbf16>, vector<256x256xbf16>, vector<128x256xf32> -> vector<128x256xf32>
    %c0_9 = arith.constant 0 : index
    %c0_10 = arith.constant 0 : index
    %11 = vector.load %arg5[%c0_9, %c0_10] : memref<1x256xf32, #tpu.memory_space<vmem>>, vector<1x256xf32>
    %12 = vector.broadcast %11 : vector<1x256xf32> to vector<128x256xf32>
    %13 = arith.addf %10, %12 : vector<128x256xf32>
    %14 = arith.mulf %13, %13 : vector<128x256xf32>
    %cst_11 = arith.constant dense<0.000000e+00> : vector<128xf32>
    %15 = vector.multi_reduction <add>, %14, %cst_11 [1] : vector<128x256xf32> to vector<128xf32>
    %16 = vector.shape_cast %15 : vector<128xf32> to vector<128x1xf32>
    %17 = math.sqrt %16 : vector<128x1xf32>
    %cst_12 = arith.constant 1.000000e-07 : f32
    %18 = vector.broadcast %cst_12 : f32 to vector<128x1xf32>
    %19 = arith.addf %17, %18 : vector<128x1xf32>
    %20 = tpu.reciprocal %19 {approx = true} : vector<128x1xf32> -> vector<128x1xf32>
    %21 = vector.broadcast %20 : vector<128x1xf32> to vector<128x256xf32>
    %22 = arith.mulf %13, %21 : vector<128x256xf32>
    %c0_13 = arith.constant 0 : index
    %c0_14 = arith.constant 0 : index
    %23 = vector.load %arg6[%c0_13, %c0_14] : memref<128x256xf32, #tpu.memory_space<vmem>>, vector<128x256xf32>
    tpu.vector_store %arg6[%c0_13, %c0_14], %22 {strides = array<i32>} : memref<128x256xf32, #tpu.memory_space<vmem>>, vector<128x256xf32>,
    return
  }
  func.func @transform_0(%arg0: i32) -> (i32, i32) {
    %c0_i32 = arith.constant 0 : i32
    %c0_i32_0 = arith.constant 0 : i32
    return %arg0, %c0_i32 : i32, i32
  }
  func.func @transform_1(%arg0: i32) -> (i32, i32) {
    %c0_i32 = arith.constant 0 : i32
    %c0_i32_0 = arith.constant 0 : i32
    %c0_i32_1 = arith.constant 0 : i32
    return %c0_i32, %c0_i32_0 : i32, i32
  }
  func.func @transform_2(%arg0: i32) -> (i32, i32) {
    %c0_i32 = arith.constant 0 : i32
    %c0_i32_0 = arith.constant 0 : i32
    %c0_i32_1 = arith.constant 0 : i32
    return %c0_i32, %c0_i32_0 : i32, i32
  }
  func.func @transform_3(%arg0: i32) -> (i32, i32) {
    %c0_i32 = arith.constant 0 : i32
    %c0_i32_0 = arith.constant 0 : i32
    %c0_i32_1 = arith.constant 0 : i32
    return %c0_i32, %c0_i32_0 : i32, i32
  }
  func.func @transform_4(%arg0: i32) -> (i32, i32) {
    %c0_i32 = arith.constant 0 : i32
    %c0_i32_0 = arith.constant 0 : i32
    %c0_i32_1 = arith.constant 0 : i32
    return %c0_i32, %c0_i32_0 : i32, i32
  }
  func.func @transform_5(%arg0: i32) -> (i32, i32) {
    %c0_i32 = arith.constant 0 : i32
    %c0_i32_0 = arith.constant 0 : i32
    return %arg0, %c0_i32 : i32, i32
  }
}

</mosaic_0001>

<llo_original>
// kernel: _sample_and_project.1
$region0: #{_sample_and_project.1}
  #allocation0 [shape = 'u32[]', space=smem, size = 0x4, offset = 0x4, fixed_abs, tag = 'smem constant byte address 0x4 - core index']
  #allocation1 [shape = 'u32[144,128]{1,0:T(1,128)}', space=vmem, size = 0x12000, scoped, tag = 'internal scratch']
  %s0 = inlined_call_operand.vmem [shape: bf16[128,4], index: 0, kind: input, shape index: {}]
  %s1 = inlined_call_operand.vmem [shape: bf16[4,256], index: 1, kind: input, shape index: {}]
  %s2 = inlined_call_operand.vmem [shape: f32[1,256], index: 2, kind: input, shape index: {}]
  %s3 = inlined_call_operand.vmem [shape: bf16[256,256], index: 3, kind: input, shape index: {}]
  %s4 = inlined_call_operand.vmem [shape: f32[1,256], index: 4, kind: input, shape index: {}]
  %s5 = inlined_call_operand.hbm [shape: f32[128,256], index: 5, kind: output, shape index: {}]
  %s6 = sld [smem:[#allocation0]]
  $region30: #{_sample_and_project.1} parent=0
    _
  %s8 = ssub.s32 1, %s6
  %s9 = scalar_select 0, %s8, %s6
  $region1: #{_sample_and_project.1} parent=0
    #allocation2 [shape = 'u8[131072]{0}', space=vmem, size = 0x20000, scoped, tag = 'output window, operand 0, single buffered']
    #allocation3 [shape = 's32[1]{0}', space=sflag, size = 0x4, scoped, tag = 'scoped memory for _sample_and_project.1']
    %10 = vsyncpa [#allocation3], 0
    // Predicated region
    $region2: #{_sample_and_project.1} parent=1 // pred_check
      _
    $region3: #{_sample_and_project.1} parent=1 // pred_check_branch
      %12 = sbr.rel (0) target = $region5
    $region4: #{_sample_and_project.1} parent=1 // pred_region
      _
    $region5: #{_sample_and_project.1} parent=1 // pred_fallthru
      _
    // Predicated region
    $region6: #{_sample_and_project.1} parent=1 // pred_check
      _
    $region7: #{_sample_and_project.1} parent=1 // pred_check_branch
      %14 = sbr.rel (0) target = $region9
    $region8: #{_sample_and_project.1} parent=1 // pred_region
      _
    $region9: #{_sample_and_project.1} parent=1 // pred_fallthru
      _
    // Predicated region
    $region10: #{_sample_and_project.1} parent=1 // pred_check
      _
    $region11: #{_sample_and_project.1} parent=1 // pred_check_branch
      %16 = sbr.rel (0) target = $region13
    $region12: #{_sample_and_project.1} parent=1 // pred_region
      _
    $region13: #{_sample_and_project.1} parent=1 // pred_fallthru
      _
    // Predicated region
    $region14: #{_sample_and_project.1} parent=1 // pred_check
      _
    $region15: #{_sample_and_project.1} parent=1 // pred_check_branch
      %18 = sbr.rel (0) target = $region17
    $region16: #{_sample_and_project.1} parent=1 // pred_region
      _
    $region17: #{_sample_and_project.1} parent=1 // pred_fallthru
      _
    // Predicated region
    $region18: #{_sample_and_project.1} parent=1 // pred_check
      _
    $region19: #{_sample_and_project.1} parent=1 // pred_check_branch
      %20 = sbr.rel (0) target = $region21
    $region20: #{_sample_and_project.1} parent=1 // pred_region
      _
    $region21: #{_sample_and_project.1} parent=1 // pred_fallthru
      _
    %v22 = vld [vmem:[%s0] sm:$0xf]
    %v23 = vld [vmem:[%s0 + $0x4] sm:$0xf]
    %v24 = vld [vmem:[%s0 + $0x8] sm:$0xf]
    %v25 = vld [vmem:[%s0 + $0xc] sm:$0xf]
    %v26 = vld [vmem:[%s0 + $0x10] sm:$0xf]
    %v27 = vld [vmem:[%s0 + $0x14] sm:$0xf]
    %v28 = vld [vmem:[%s0 + $0x18] sm:$0xf]
    %v29 = vld [vmem:[%s0 + $0x1c] sm:$0xf]
    %v30 = vld [vmem:[%s0 + $0x20] sm:$0xf]
    %v31 = vld [vmem:[%s0 + $0x24] sm:$0xf]
    %v32 = vld [vmem:[%s0 + $0x28] sm:$0xf]
    %v33 = vld [vmem:[%s0 + $0x2c] sm:$0xf]
    %v34 = vld [vmem:[%s0 + $0x30] sm:$0xf]
    %v35 = vld [vmem:[%s0 + $0x34] sm:$0xf]
    %v36 = vld [vmem:[%s0 + $0x38] sm:$0xf]
    %v37 = vld [vmem:[%s0 + $0x3c] sm:$0xf]
    %v38 = vld [vmem:[%s1] sm:$0xf]
    %v39 = vld [vmem:[%s2] sm:$0x3]
    %v41 = vlaneseq
    %v42 = vshrl.u32 %v41, 7
    %v43 = vsub.s32 0, %v42
    %v44 = vrot.slane %v39, %v43
    %v45 = vlaneseq
    %v46 = vshrl.u32 %v45, 7
    %v47 = vsub.s32 1, %v46
    %v48 = vrot.slane %v39, %v47
    %v67 = vunpack.c.l.b16 %v22
    %v68 = vunpack.c.l.b16 %v23
    %v69 = vunpack.c.l.b16 %v24
    %v70 = vunpack.c.l.b16 %v25
    %v71 = vunpack.c.l.b16 %v26
    %v72 = vunpack.c.l.b16 %v27
    %v73 = vunpack.c.l.b16 %v28
    %v74 = vunpack.c.l.b16 %v29
    %v75 = vunpack.c.l.b16 %v30
    %v76 = vunpack.c.l.b16 %v31
    %v77 = vunpack.c.l.b16 %v32
    %v78 = vunpack.c.l.b16 %v33
    %v79 = vunpack.c.l.b16 %v34
    %v80 = vunpack.c.l.b16 %v35
    %v81 = vunpack.c.l.b16 %v36
    %v82 = vunpack.c.l.b16 %v37
    %v83 = vpack.c.b16 %v68, %v67
    %v84 = vpack.c.b16 %v70, %v69
    %v85 = vpack.c.b16 %v72, %v71
    %v86 = vpack.c.b16 %v74, %v73
    %v87 = vpack.c.b16 %v76, %v75
    %v88 = vpack.c.b16 %v78, %v77
    %v89 = vpack.c.b16 %v80, %v79
    %v90 = vpack.c.b16 %v82, %v81
    %v93 = vunpack.c.l.s4 1983009808
    %v94 = vunpack.c.0.s8 %v93
    %v95 = vlaneseq
    %v96 = vshrl.u32 %v95, 7
    %v97 = vsub.s32 %v94, %v96
    %v98 = vrot.slane %v38, %v97
    %v99 = vcombine.high %v98, %v98
    %vm100 = vcmask 31744
    %v102 = vsel %vm100, %v83, 0
    %v105 = vsel %vm100, %v84, 0
    %v108 = vsel %vm100, %v85, 0
    %v111 = vsel %vm100, %v86, 0
    %v114 = vsel %vm100, %v87, 0
    %v117 = vsel %vm100, %v88, 0
    %v120 = vsel %vm100, %v89, 0
    %v123 = vsel %vm100, %v90, 0
    %vm125 = vcmask 1041408
    %v127 = vsel %vm125, %v98, 0
    %v130 = vsel %vm125, %v99, 0
    %132 = vmatprep.subr.bf16.mxu0 0
    %133 = vmatpush1.bf16.msra.mxu0 0
    %134 = vmatprep.subr.bf16.mxu0 0
    %135 = vmatpush1.bf16.msra.mxu0 0
    %136 = vmatprep.subr.bf16.mxu0 0
    %137 = vmatpush1.bf16.msra.mxu0 0
    %138 = vmatprep.subr.bf16.mxu0 0
    %139 = vmatpush1.bf16.msra.mxu0 0
    %140 = vmatprep.subr.bf16.mxu0 0
    %141 = vmatpush1.bf16.msra.mxu0 0
    %142 = vmatprep.subr.bf16.mxu0 0
    %143 = vmatpush1.bf16.msra.mxu0 0
    %144 = vmatprep.subr.bf16.mxu0 0
    %145 = vmatpush1.bf16.msra.mxu0 0
    %146 = vmatprep.subr.bf16.mxu0 %v130
    %147 = vmatpush1.bf16.msra.mxu0 %v127
    %148 = vmatprep.subr.bf16.mxu0 0
    %149 = vmatpush2.bf16.msra.mxu0 0
    %150 = vmatprep.subr.bf16.mxu0 0
    %151 = vmatpush2.bf16.msra.mxu0 0
    %152 = vmatprep.subr.bf16.mxu0 0
    %153 = vmatpush2.bf16.msra.mxu0 0
    %154 = vmatprep.subr.bf16.mxu0 0
    %155 = vmatpush2.bf16.msra.mxu0 0
    %156 = vmatprep.subr.bf16.mxu0 0
    %157 = vmatpush2.bf16.msra.mxu0 0
    %158 = vmatprep.subr.bf16.mxu0 0
    %159 = vmatpush2.bf16.msra.mxu0 0
    %160 = vmatprep.subr.bf16.mxu0 0
    %161 = vmatpush2.bf16.msra.mxu0 0
    %162 = vmatprep.subr.bf16.mxu0 0
    %163 = vmatpush2.bf16.msra.mxu0 0
    %164 = vmatprep.mubr.bf16.mxu0 0
    %165 = vmatmul.mubr.bf16.gmra.mxu0 %v102
    %v166 = vpop.f32.mrf.mxu0
    %v167 = vadd.f32 %v44, %v166
    %v168 = vpop.f32.mrf.mxu0
    %v169 = vadd.f32 %v48, %v168
    %v170 = vpop.f32.mrf.mxu0
    %v171 = vadd.f32 %v44, %v170
    %v172 = vpop.f32.mrf.mxu0
    %v173 = vadd.f32 %v48, %v172
    %174 = vmatprep.mubr.bf16.mxu0 0
    %175 = vmatmul.mubr.bf16.gmra.mxu0 %v105
    %v176 = vpop.f32.mrf.mxu0
    %v177 = vadd.f32 %v44, %v176
    %v178 = vpop.f32.mrf.mxu0
    %v179 = vadd.f32 %v48, %v178
    %v180 = vpop.f32.mrf.mxu0
    %v181 = vadd.f32 %v44, %v180
    %v182 = vpop.f32.mrf.mxu0
    %v183 = vadd.f32 %v48, %v182
    %184 = vmatprep.mubr.bf16.mxu0 0
    %185 = vmatmul.mubr.bf16.gmra.mxu0 %v108
    %v186 = vpop.f32.mrf.mxu0
    %v187 = vadd.f32 %v44, %v186
    %v188 = vpop.f32.mrf.mxu0
    %v189 = vadd.f32 %v48, %v188
    %v190 = vpop.f32.mrf.mxu0
    %v191 = vadd.f32 %v44, %v190
    %v192 = vpop.f32.mrf.mxu0
    %v193 = vadd.f32 %v48, %v192
    %194 = vmatprep.mubr.bf16.mxu0 0
    %195 = vmatmul.mubr.bf16.gmra.mxu0 %v111
    %v196 = vpop.f32.mrf.mxu0
    %v197 = vadd.f32 %v44, %v196
    %v198 = vpop.f32.mrf.mxu0
    %v199 = vadd.f32 %v48, %v198
    %v200 = vpop.f32.mrf.mxu0
    %v201 = vadd.f32 %v44, %v200
    %v202 = vpop.f32.mrf.mxu0
    %v203 = vadd.f32 %v48, %v202
    %204 = vmatprep.mubr.bf16.mxu0 0
    %205 = vmatmul.mubr.bf16.gmra.mxu0 %v114
    %v206 = vpop.f32.mrf.mxu0
    %v207 = vadd.f32 %v44, %v206
    %v208 = vpop.f32.mrf.mxu0
    %v209 = vadd.f32 %v48, %v208
    %v210 = vpop.f32.mrf.mxu0
    %v211 = vadd.f32 %v44, %v210
    %v212 = vpop.f32.mrf.mxu0
    %v213 = vadd.f32 %v48, %v212
    %214 = vmatprep.mubr.bf16.mxu0 0
    %215 = vmatmul.mubr.bf16.gmra.mxu0 %v117
    %v216 = vpop.f32.mrf.mxu0
    %v217 = vadd.f32 %v44, %v216
    %v218 = vpop.f32.mrf.mxu0
    %v219 = vadd.f32 %v48, %v218
    %v220 = vpop.f32.mrf.mxu0
    %v221 = vadd.f32 %v44, %v220
    %v222 = vpop.f32.mrf.mxu0
    %v223 = vadd.f32 %v48, %v222
    %224 = vmatprep.mubr.bf16.mxu0 0
    %225 = vmatmul.mubr.bf16.gmra.mxu0 %v120
    %v226 = vpop.f32.mrf.mxu0
    %v227 = vadd.f32 %v44, %v226
    %v228 = vpop.f32.mrf.mxu0
    %v229 = vadd.f32 %v48, %v228
    %v230 = vpop.f32.mrf.mxu0
    %v231 = vadd.f32 %v44, %v230
    %v232 = vpop.f32.mrf.mxu0
    %v233 = vadd.f32 %v48, %v232
    %234 = vmatprep.mubr.bf16.mxu0 0
    %235 = vmatmul.mubr.bf16.gmra.mxu0 %v123
    %v236 = vpop.f32.mrf.mxu0
    %v237 = vadd.f32 %v44, %v236
    %v238 = vpop.f32.mrf.mxu0
    %v239 = vadd.f32 %v48, %v238
    %v240 = vpop.f32.mrf.mxu0
    %v241 = vadd.f32 %v44, %v240
    %v242 = vpop.f32.mrf.mxu0
    %v243 = vadd.f32 %v48, %v242
    %244 = vdwg.mxu0
    %v245 = vmax.f32 %v167, 0.0
    %v246 = vmax.f32 %v169, 0.0
    %v247 = vmax.f32 %v171, 0.0
    %v248 = vmax.f32 %v173, 0.0
    %v249 = vmax.f32 %v177, 0.0
    %v250 = vmax.f32 %v179, 0.0
    %v251 = vmax.f32 %v181, 0.0
    %v252 = vmax.f32 %v183, 0.0
    %v253 = vmax.f32 %v187, 0.0
    %v254 = vmax.f32 %v189, 0.0
    %v255 = vmax.f32 %v191, 0.0
    %v256 = vmax.f32 %v193, 0.0
    %v257 = vmax.f32 %v197, 0.0
    %v258 = vmax.f32 %v199, 0.0
    %v259 = vmax.f32 %v201, 0.0
    %v260 = vmax.f32 %v203, 0.0
    %v261 = vmax.f32 %v207, 0.0
    %v262 = vmax.f32 %v209, 0.0
    %v263 = vmax.f32 %v211, 0.0
    %v264 = vmax.f32 %v213, 0.0
    %v265 = vmax.f32 %v217, 0.0
    %v266 = vmax.f32 %v219, 0.0
    %v267 = vmax.f32 %v221, 0.0
    %v268 = vmax.f32 %v223, 0.0
    %v269 = vmax.f32 %v227, 0.0
    %v270 = vmax.f32 %v229, 0.0
    %v271 = vmax.f32 %v231, 0.0
    %v272 = vmax.f32 %v233, 0.0
    %v273 = vmax.f32 %v237, 0.0
    %v274 = vmax.f32 %v239, 0.0
    %v275 = vmax.f32 %v241, 0.0
    %v276 = vmax.f32 %v243, 0.0
    %v277 = vpack.c.bf16 %v247, %v245
    %v278 = vpack.c.bf16 %v248, %v246
    %v279 = vpack.c.bf16 %v251, %v249
    %v280 = vpack.c.bf16 %v252, %v250
    %v281 = vpack.c.bf16 %v255, %v253
    %v282 = vpack.c.bf16 %v256, %v254
    %v283 = vpack.c.bf16 %v259, %v257
    %v284 = vpack.c.bf16 %v260, %v258
    %v285 = vpack.c.bf16 %v263, %v261
    %v286 = vpack.c.bf16 %v264, %v262
    %v287 = vpack.c.bf16 %v267, %v265
    %v288 = vpack.c.bf16 %v268, %v266
    %v289 = vpack.c.bf16 %v271, %v269
    %v290 = vpack.c.bf16 %v272, %v270
    %v291 = vpack.c.bf16 %v275, %v273
    %v292 = vpack.c.bf16 %v276, %v274
    %v293 = vld [vmem:[%s3] sm:$0xff]
    %v294 = vld [vmem:[%s3 + $0x8] sm:$0xff]
    %v295 = vld [vmem:[%s3 + $0x10] sm:$0xff]
    %v296 = vld [vmem:[%s3 + $0x18] sm:$0xff]
    %v297 = vld [vmem:[%s3 + $0x20] sm:$0xff]
    %v298 = vld [vmem:[%s3 + $0x28] sm:$0xff]
    %v299 = vld [vmem:[%s3 + $0x30] sm:$0xff]
    %v300 = vld [vmem:[%s3 + $0x38] sm:$0xff]
    %v301 = vld [vmem:[%s3 + $0x40] sm:$0xff]
    %v302 = vld [vmem:[%s3 + $0x48] sm:$0xff]
    %v303 = vld [vmem:[%s3 + $0x50] sm:$0xff]
    %v304 = vld [vmem:[%s3 + $0x58] sm:$0xff]
    %v305 = vld [vmem:[%s3 + $0x60] sm:$0xff]
    %v306 = vld [vmem:[%s3 + $0x68] sm:$0xff]
    %v307 = vld [vmem:[%s3 + $0x70] sm:$0xff]
    %v308 = vld [vmem:[%s3 + $0x78] sm:$0xff]
    %v309 = vld [vmem:[%s3 + $0x80] sm:$0xff]
    %v310 = vld [vmem:[%s3 + $0x88] sm:$0xff]
    %v311 = vld [vmem:[%s3 + $0x90] sm:$0xff]
    %v312 = vld [vmem:[%s3 + $0x98] sm:$0xff]
    %v313 = vld [vmem:[%s3 + $0xa0] sm:$0xff]
    %v314 = vld [vmem:[%s3 + $0xa8] sm:$0xff]
    %v315 = vld [vmem:[%s3 + $0xb0] sm:$0xff]
    %v316 = vld [vmem:[%s3 + $0xb8] sm:$0xff]
    %v317 = vld [vmem:[%s3 + $0xc0] sm:$0xff]
    %v318 = vld [vmem:[%s3 + $0xc8] sm:$0xff]
    %v319 = vld [vmem:[%s3 + $0xd0] sm:$0xff]
    %v320 = vld [vmem:[%s3 + $0xd8] sm:$0xff]
    %v321 = vld [vmem:[%s3 + $0xe0] sm:$0xff]
    %v322 = vld [vmem:[%s3 + $0xe8] sm:$0xff]
    %v323 = vld [vmem:[%s3 + $0xf0] sm:$0xff]
    %v324 = vld [vmem:[%s3 + $0xf8] sm:$0xff]
    %v325 = vld [vmem:[%s4] sm:$0x3]
    %v327 = vlaneseq
    %v328 = vshrl.u32 %v327, 7
    %v329 = vsub.s32 0, %v328
    %v330 = vrot.slane %v325, %v329
    %v331 = vlaneseq
    %v332 = vshrl.u32 %v331, 7
    %v333 = vsub.s32 1, %v332
    %v334 = vrot.slane %v325, %v333
    %v369 = vunpack.c.l.b16 %v293
    %v370 = vunpack.c.h.b16 %v293
    %v371 = vunpack.c.l.b16 %v294
    %v372 = vunpack.c.h.b16 %v294
    %v373 = vunpack.c.l.b16 %v295
    %v374 = vunpack.c.h.b16 %v295
    %v375 = vunpack.c.l.b16 %v296
    %v376 = vunpack.c.h.b16 %v296
    %v377 = vunpack.c.l.b16 %v297
    %v378 = vunpack.c.h.b16 %v297
    %v379 = vunpack.c.l.b16 %v298
    %v380 = vunpack.c.h.b16 %v298
    %v381 = vunpack.c.l.b16 %v299
    %v382 = vunpack.c.h.b16 %v299
    %v383 = vunpack.c.l.b16 %v300
    %v384 = vunpack.c.h.b16 %v300
    %v385 = vunpack.c.l.b16 %v301
    %v386 = vunpack.c.h.b16 %v301
    %v387 = vunpack.c.l.b16 %v302
    %v388 = vunpack.c.h.b16 %v302
    %v389 = vunpack.c.l.b16 %v303
    %v390 = vunpack.c.h.b16 %v303
    %v391 = vunpack.c.l.b16 %v304
    %v392 = vunpack.c.h.b16 %v304
    %v393 = vunpack.c.l.b16 %v305
    %v394 = vunpack.c.h.b16 %v305
    %v395 = vunpack.c.l.b16 %v306
    %v396 = vunpack.c.h.b16 %v306
    %v397 = vunpack.c.l.b16 %v307
    %v398 = vunpack.c.h.b16 %v307
    %v399 = vunpack.c.l.b16 %v308
    %v400 = vunpack.c.h.b16 %v308
    %v401 = vunpack.c.l.b16 %v309
    %v402 = vunpack.c.h.b16 %v309
    %v403 = vunpack.c.l.b16 %v310
    %v404 = vunpack.c.h.b16 %v310
    %v405 = vunpack.c.l.b16 %v311
    %v406 = vunpack.c.h.b16 %v311
    %v407 = vunpack.c.l.b16 %v312
    %v408 = vunpack.c.h.b16 %v312
    %v409 = vunpack.c.l.b16 %v313
    %v410 = vunpack.c.h.b16 %v313
    %v411 = vunpack.c.l.b16 %v314
    %v412 = vunpack.c.h.b16 %v314
    %v413 = vunpack.c.l.b16 %v315
    %v414 = vunpack.c.h.b16 %v315
    %v415 = vunpack.c.l.b16 %v316
    %v416 = vunpack.c.h.b16 %v316
    %v417 = vunpack.c.l.b16 %v317
    %v418 = vunpack.c.h.b16 %v317
    %v419 = vunpack.c.l.b16 %v318
    %v420 = vunpack.c.h.b16 %v318
    %v421 = vunpack.c.l.b16 %v319
    %v422 = vunpack.c.h.b16 %v319
    %v423 = vunpack.c.l.b16 %v320
    %v424 = vunpack.c.h.b16 %v320
    %v425 = vunpack.c.l.b16 %v321
    %v426 = vunpack.c.h.b16 %v321
    %v427 = vunpack.c.l.b16 %v322
    %v428 = vunpack.c.h.b16 %v322
    %v429 = vunpack.c.l.b16 %v323
    %v430 = vunpack.c.h.b16 %v323
    %v431 = vunpack.c.l.b16 %v324
    %v432 = vunpack.c.h.b16 %v324
    %v433 = vpack.c.b16 %v371, %v369
    %v434 = vpack.c.b16 %v372, %v370
    %v435 = vpack.c.b16 %v375, %v373
    %v436 = vpack.c.b16 %v376, %v374
    %v437 = vpack.c.b16 %v379, %v377
    %v438 = vpack.c.b16 %v380, %v378
    %v439 = vpack.c.b16 %v383, %v381
    %v440 = vpack.c.b16 %v384, %v382
    %v441 = vpack.c.b16 %v387, %v385
    %v442 = vpack.c.b16 %v388, %v386
    %v443 = vpack.c.b16 %v391, %v389
    %v444 = vpack.c.b16 %v392, %v390
    %v445 = vpack.c.b16 %v395, %v393
    %v446 = vpack.c.b16 %v396, %v394
    %v447 = vpack.c.b16 %v399, %v397
    %v448 = vpack.c.b16 %v400, %v398
    %v449 = vpack.c.b16 %v403, %v401
    %v450 = vpack.c.b16 %v404, %v402
    %v451 = vpack.c.b16 %v407, %v405
    %v452 = vpack.c.b16 %v408, %v406
    %v453 = vpack.c.b16 %v411, %v409
    %v454 = vpack.c.b16 %v412, %v410
    %v455 = vpack.c.b16 %v415, %v413
    %v456 = vpack.c.b16 %v416, %v414
    %v457 = vpack.c.b16 %v419, %v417
    %v458 = vpack.c.b16 %v420, %v418
    %v459 = vpack.c.b16 %v423, %v421
    %v460 = vpack.c.b16 %v424, %v422
    %v461 = vpack.c.b16 %v427, %v425
    %v462 = vpack.c.b16 %v428, %v426
    %v463 = vpack.c.b16 %v431, %v429
    %v464 = vpack.c.b16 %v432, %v430
    %497 = vmatprep.subr.bf16.mxu0 %v448
    %498 = vmatpush1.bf16.msra.mxu0 %v447
    %499 = vmatprep.subr.bf16.mxu0 %v446
    %500 = vmatpush1.bf16.msra.mxu0 %v445
    %501 = vmatprep.subr.bf16.mxu0 %v444
    %502 = vmatpush1.bf16.msra.mxu0 %v443
    %503 = vmatprep.subr.bf16.mxu0 %v442
    %504 = vmatpush1.bf16.msra.mxu0 %v441
    %505 = vmatprep.subr.bf16.mxu0 %v440
    %506 = vmatpush1.bf16.msra.mxu0 %v439
    %507 = vmatprep.subr.bf16.mxu0 %v438
    %508 = vmatpush1.bf16.msra.mxu0 %v437
    %509 = vmatprep.subr.bf16.mxu0 %v436
    %510 = vmatpush1.bf16.msra.mxu0 %v435
    %511 = vmatprep.subr.bf16.mxu0 %v434
    %512 = vmatpush1.bf16.msra.mxu0 %v433
    %513 = vmatprep.subr.bf16.mxu0 %v464
    %514 = vmatpush2.bf16.msra.mxu0 %v463
    %515 = vmatprep.subr.bf16.mxu0 %v462
    %516 = vmatpush2.bf16.msra.mxu0 %v461
    %517 = vmatprep.subr.bf16.mxu0 %v460
    %518 = vmatpush2.bf16.msra.mxu0 %v459
    %519 = vmatprep.subr.bf16.mxu0 %v458
    %520 = vmatpush2.bf16.msra.mxu0 %v457
    %521 = vmatprep.subr.bf16.mxu0 %v456
    %522 = vmatpush2.bf16.msra.mxu0 %v455
    %523 = vmatprep.subr.bf16.mxu0 %v454
    %524 = vmatpush2.bf16.msra.mxu0 %v453
    %525 = vmatprep.subr.bf16.mxu0 %v452
    %526 = vmatpush2.bf16.msra.mxu0 %v451
    %527 = vmatprep.subr.bf16.mxu0 %v450
    %528 = vmatpush2.bf16.msra.mxu0 %v449
    %529 = vmatprep.mubr.bf16.mxu0 %v278
    %530 = vmatmul.mubr.bf16.gmra.mxu0 %v277
    %v531 = vpop.f32.mrf.mxu0
    %v532 = vadd.f32 %v330, %v531
    %v533 = vpop.f32.mrf.mxu0
    %v534 = vadd.f32 %v334, %v533
    %v535 = vpop.f32.mrf.mxu0
    %v536 = vadd.f32 %v330, %v535
    %v537 = vpop.f32.mrf.mxu0
    %v538 = vadd.f32 %v334, %v537
    %539 = vmatprep.mubr.bf16.mxu0 %v280
    %540 = vmatmul.mubr.bf16.gmra.mxu0 %v279
    %v541 = vpop.f32.mrf.mxu0
    %v542 = vadd.f32 %v330, %v541
    %v543 = vpop.f32.mrf.mxu0
    %v544 = vadd.f32 %v334, %v543
    %v545 = vpop.f32.mrf.mxu0
    %v546 = vadd.f32 %v330, %v545
    %v547 = vpop.f32.mrf.mxu0
    %v548 = vadd.f32 %v334, %v547
    %549 = vmatprep.mubr.bf16.mxu0 %v282
    %550 = vmatmul.mubr.bf16.gmra.mxu0 %v281
    %v551 = vpop.f32.mrf.mxu0
    %v552 = vadd.f32 %v330, %v551
    %v553 = vpop.f32.mrf.mxu0
    %v554 = vadd.f32 %v334, %v553
    %v555 = vpop.f32.mrf.mxu0
    %v556 = vadd.f32 %v330, %v555
    %v557 = vpop.f32.mrf.mxu0
    %v558 = vadd.f32 %v334, %v557
    %559 = vmatprep.mubr.bf16.mxu0 %v284
    %560 = vmatmul.mubr.bf16.gmra.mxu0 %v283
    %v561 = vpop.f32.mrf.mxu0
    %v562 = vadd.f32 %v330, %v561
    %v563 = vpop.f32.mrf.mxu0
    %v564 = vadd.f32 %v334, %v563
    %v565 = vpop.f32.mrf.mxu0
    %v566 = vadd.f32 %v330, %v565
    %v567 = vpop.f32.mrf.mxu0
    %v568 = vadd.f32 %v334, %v567
    %569 = vmatprep.mubr.bf16.mxu0 %v286
    %570 = vmatmul.mubr.bf16.gmra.mxu0 %v285
    %v571 = vpop.f32.mrf.mxu0
    %v572 = vadd.f32 %v330, %v571
    %v573 = vpop.f32.mrf.mxu0
    %v574 = vadd.f32 %v334, %v573
    %v575 = vpop.f32.mrf.mxu0
    %v576 = vadd.f32 %v330, %v575
    %v577 = vpop.f32.mrf.mxu0
    %v578 = vadd.f32 %v334, %v577
    %579 = vmatprep.mubr.bf16.mxu0 %v288
    %580 = vmatmul.mubr.bf16.gmra.mxu0 %v287
    %v581 = vpop.f32.mrf.mxu0
    %v582 = vadd.f32 %v330, %v581
    %v583 = vpop.f32.mrf.mxu0
    %v584 = vadd.f32 %v334, %v583
    %v585 = vpop.f32.mrf.mxu0
    %v586 = vadd.f32 %v330, %v585
    %v587 = vpop.f32.mrf.mxu0
    %v588 = vadd.f32 %v334, %v587
    %589 = vmatprep.mubr.bf16.mxu0 %v290
    %590 = vmatmul.mubr.bf16.gmra.mxu0 %v289
    %v591 = vpop.f32.mrf.mxu0
    %v592 = vadd.f32 %v330, %v591
    %v593 = vpop.f32.mrf.mxu0
    %v594 = vadd.f32 %v334, %v593
    %v595 = vpop.f32.mrf.mxu0
    %v596 = vadd.f32 %v330, %v595
    %v597 = vpop.f32.mrf.mxu0
    %v598 = vadd.f32 %v334, %v597
    %599 = vmatprep.mubr.bf16.mxu0 %v292
    %600 = vmatmul.mubr.bf16.gmra.mxu0 %v291
    %v601 = vpop.f32.mrf.mxu0
    %v602 = vadd.f32 %v330, %v601
    %v603 = vpop.f32.mrf.mxu0
    %v604 = vadd.f32 %v334, %v603
    %v605 = vpop.f32.mrf.mxu0
    %v606 = vadd.f32 %v330, %v605
    %v607 = vpop.f32.mrf.mxu0
    %v608 = vadd.f32 %v334, %v607
    %609 = vdwg.mxu0
    %v610 = vmul.f32 %v532, %v532
    %v611 = vmul.f32 %v534, %v534
    %v612 = vmul.f32 %v536, %v536
    %v613 = vmul.f32 %v538, %v538
    %v614 = vmul.f32 %v542, %v542
    %v615 = vmul.f32 %v544, %v544
    %v616 = vmul.f32 %v546, %v546
    %v617 = vmul.f32 %v548, %v548
    %v618 = vmul.f32 %v552, %v552
    %v619 = vmul.f32 %v554, %v554
    %v620 = vmul.f32 %v556, %v556
    %v621 = vmul.f32 %v558, %v558
    %v622 = vmul.f32 %v562, %v562
    %v623 = vmul.f32 %v564, %v564
    %v624 = vmul.f32 %v566, %v566
    %v625 = vmul.f32 %v568, %v568
    %v626 = vmul.f32 %v572, %v572
    %v627 = vmul.f32 %v574, %v574
    %v628 = vmul.f32 %v576, %v576
    %v629 = vmul.f32 %v578, %v578
    %v630 = vmul.f32 %v582, %v582
    %v631 = vmul.f32 %v584, %v584
    %v632 = vmul.f32 %v586, %v586
    %v633 = vmul.f32 %v588, %v588
    %v634 = vmul.f32 %v592, %v592
    %v635 = vmul.f32 %v594, %v594
    %v636 = vmul.f32 %v596, %v596
    %v637 = vmul.f32 %v598, %v598
    %v638 = vmul.f32 %v602, %v602
    %v639 = vmul.f32 %v604, %v604
    %v640 = vmul.f32 %v606, %v606
    %v641 = vmul.f32 %v608, %v608
    %v642 = vadd.f32 %v610, %v611
    %643 = vadd.xlane.f32.xlu0 %v642
    %v644 = vpop.xlane.xlu0 %643
    %v645 = vadd.f32 %v612, %v613
    %646 = vadd.xlane.f32.xlu0 %v645
    %v647 = vpop.xlane.xlu0 %646
    %v648 = vadd.f32 %v614, %v615
    %649 = vadd.xlane.f32.xlu0 %v648
    %v650 = vpop.xlane.xlu0 %649
    %v651 = vadd.f32 %v616, %v617
    %652 = vadd.xlane.f32.xlu0 %v651
    %v653 = vpop.xlane.xlu0 %652
    %v654 = vadd.f32 %v618, %v619
    %655 = vadd.xlane.f32.xlu0 %v654
    %v656 = vpop.xlane.xlu0 %655
    %v657 = vadd.f32 %v620, %v621
    %658 = vadd.xlane.f32.xlu0 %v657
    %v659 = vpop.xlane.xlu0 %658
    %v660 = vadd.f32 %v622, %v623
    %661 = vadd.xlane.f32.xlu0 %v660
    %v662 = vpop.xlane.xlu0 %661
    %v663 = vadd.f32 %v624, %v625
    %664 = vadd.xlane.f32.xlu0 %v663
    %v665 = vpop.xlane.xlu0 %664
    %v666 = vadd.f32 %v626, %v627
    %667 = vadd.xlane.f32.xlu0 %v666
    %v668 = vpop.xlane.xlu0 %667
    %v669 = vadd.f32 %v628, %v629
    %670 = vadd.xlane.f32.xlu0 %v669
    %v671 = vpop.xlane.xlu0 %670
    %v672 = vadd.f32 %v630, %v631
    %673 = vadd.xlane.f32.xlu0 %v672
    %v674 = vpop.xlane.xlu0 %673
    %v675 = vadd.f32 %v632, %v633
    %676 = vadd.xlane.f32.xlu0 %v675
    %v677 = vpop.xlane.xlu0 %676
    %v678 = vadd.f32 %v634, %v635
    %679 = vadd.xlane.f32.xlu0 %v678
    %v680 = vpop.xlane.xlu0 %679
    %v681 = vadd.f32 %v636, %v637
    %682 = vadd.xlane.f32.xlu0 %v681
    %v683 = vpop.xlane.xlu0 %682
    %v684 = vadd.f32 %v638, %v639
    %685 = vadd.xlane.f32.xlu0 %v684
    %v686 = vpop.xlane.xlu0 %685
    %v687 = vadd.f32 %v640, %v641
    %688 = vadd.xlane.f32.xlu0 %v687
    %v689 = vpop.xlane.xlu0 %688
    %v690 = vrsqrt.pop %v644
    %v691 = vmul.f32 %v644, %v690
    %vm692 = vcmp.eq.f32.partialorder %v644, inf
    %v693 = vsel %vm692, %v644, %v691
    %vm694 = vcmp.eq.f32.partialorder %v644, 0.0
    %v695 = vand.u32 %v644, 2147483648
    %v696 = vsel %vm694, %v695, %v693
    %v697 = vrsqrt.pop %v647
    %v698 = vmul.f32 %v647, %v697
    %vm699 = vcmp.eq.f32.partialorder %v647, inf
    %v700 = vsel %vm699, %v647, %v698
    %vm701 = vcmp.eq.f32.partialorder %v647, 0.0
    %v702 = vand.u32 %v647, 2147483648
    %v703 = vsel %vm701, %v702, %v700
    %v704 = vrsqrt.pop %v650
    %v705 = vmul.f32 %v650, %v704
    %vm706 = vcmp.eq.f32.partialorder %v650, inf
    %v707 = vsel %vm706, %v650, %v705
    %vm708 = vcmp.eq.f32.partialorder %v650, 0.0
    %v709 = vand.u32 %v650, 2147483648
    %v710 = vsel %vm708, %v709, %v707
    %v711 = vrsqrt.pop %v653
    %v712 = vmul.f32 %v653, %v711
    %vm713 = vcmp.eq.f32.partialorder %v653, inf
    %v714 = vsel %vm713, %v653, %v712
    %vm715 = vcmp.eq.f32.partialorder %v653, 0.0
    %v716 = vand.u32 %v653, 2147483648
    %v717 = vsel %vm715, %v716, %v714
    %v718 = vrsqrt.pop %v656
    %v719 = vmul.f32 %v656, %v718
    %vm720 = vcmp.eq.f32.partialorder %v656, inf
    %v721 = vsel %vm720, %v656, %v719
    %vm722 = vcmp.eq.f32.partialorder %v656, 0.0
    %v723 = vand.u32 %v656, 2147483648
    %v724 = vsel %vm722, %v723, %v721
    %v725 = vrsqrt.pop %v659
    %v726 = vmul.f32 %v659, %v725
    %vm727 = vcmp.eq.f32.partialorder %v659, inf
    %v728 = vsel %vm727, %v659, %v726
    %vm729 = vcmp.eq.f32.partialorder %v659, 0.0
    %v730 = vand.u32 %v659, 2147483648
    %v731 = vsel %vm729, %v730, %v728
    %v732 = vrsqrt.pop %v662
    %v733 = vmul.f32 %v662, %v732
    %vm734 = vcmp.eq.f32.partialorder %v662, inf
    %v735 = vsel %vm734, %v662, %v733
    %vm736 = vcmp.eq.f32.partialorder %v662, 0.0
    %v737 = vand.u32 %v662, 2147483648
    %v738 = vsel %vm736, %v737, %v735
    %v739 = vrsqrt.pop %v665
    %v740 = vmul.f32 %v665, %v739
    %vm741 = vcmp.eq.f32.partialorder %v665, inf
    %v742 = vsel %vm741, %v665, %v740
    %vm743 = vcmp.eq.f32.partialorder %v665, 0.0
    %v744 = vand.u32 %v665, 2147483648
    %v745 = vsel %vm743, %v744, %v742
    %v746 = vrsqrt.pop %v668
    %v747 = vmul.f32 %v668, %v746
    %vm748 = vcmp.eq.f32.partialorder %v668, inf
    %v749 = vsel %vm748, %v668, %v747
    %vm750 = vcmp.eq.f32.partialorder %v668, 0.0
    %v751 = vand.u32 %v668, 2147483648
    %v752 = vsel %vm750, %v751, %v749
    %v753 = vrsqrt.pop %v671
    %v754 = vmul.f32 %v671, %v753
    %vm755 = vcmp.eq.f32.partialorder %v671, inf
    %v756 = vsel %vm755, %v671, %v754
    %vm757 = vcmp.eq.f32.partialorder %v671, 0.0
    %v758 = vand.u32 %v671, 2147483648
    %v759 = vsel %vm757, %v758, %v756
    %v760 = vrsqrt.pop %v674
    %v761 = vmul.f32 %v674, %v760
    %vm762 = vcmp.eq.f32.partialorder %v674, inf
    %v763 = vsel %vm762, %v674, %v761
    %vm764 = vcmp.eq.f32.partialorder %v674, 0.0
    %v765 = vand.u32 %v674, 2147483648
    %v766 = vsel %vm764, %v765, %v763
    %v767 = vrsqrt.pop %v677
    %v768 = vmul.f32 %v677, %v767
    %vm769 = vcmp.eq.f32.partialorder %v677, inf
    %v770 = vsel %vm769, %v677, %v768
    %vm771 = vcmp.eq.f32.partialorder %v677, 0.0
    %v772 = vand.u32 %v677, 2147483648
    %v773 = vsel %vm771, %v772, %v770
    %v774 = vrsqrt.pop %v680
    %v775 = vmul.f32 %v680, %v774
    %vm776 = vcmp.eq.f32.partialorder %v680, inf
    %v777 = vsel %vm776, %v680, %v775
    %vm778 = vcmp.eq.f32.partialorder %v680, 0.0
    %v779 = vand.u32 %v680, 2147483648
    %v780 = vsel %vm778, %v779, %v777
    %v781 = vrsqrt.pop %v683
    %v782 = vmul.f32 %v683, %v781
    %vm783 = vcmp.eq.f32.partialorder %v683, inf
    %v784 = vsel %vm783, %v683, %v782
    %vm785 = vcmp.eq.f32.partialorder %v683, 0.0
    %v786 = vand.u32 %v683, 2147483648
    %v787 = vsel %vm785, %v786, %v784
    %v788 = vrsqrt.pop %v686
    %v789 = vmul.f32 %v686, %v788
    %vm790 = vcmp.eq.f32.partialorder %v686, inf
    %v791 = vsel %vm790, %v686, %v789
    %vm792 = vcmp.eq.f32.partialorder %v686, 0.0
    %v793 = vand.u32 %v686, 2147483648
    %v794 = vsel %vm792, %v793, %v791
    %v795 = vrsqrt.pop %v689
    %v796 = vmul.f32 %v689, %v795
    %vm797 = vcmp.eq.f32.partialorder %v689, inf
    %v798 = vsel %vm797, %v689, %v796
    %vm799 = vcmp.eq.f32.partialorder %v689, 0.0
    %v800 = vand.u32 %v689, 2147483648
    %v801 = vsel %vm799, %v800, %v798
    %v802 = vadd.f32 %v696, 1e-07
    %v803 = vadd.f32 %v703, 1e-07
    %v804 = vadd.f32 %v710, 1e-07
    %v805 = vadd.f32 %v717, 1e-07
    %v806 = vadd.f32 %v724, 1e-07
    %v807 = vadd.f32 %v731, 1e-07
    %v808 = vadd.f32 %v738, 1e-07
    %v809 = vadd.f32 %v745, 1e-07
    %v810 = vadd.f32 %v752, 1e-07
    %v811 = vadd.f32 %v759, 1e-07
    %v812 = vadd.f32 %v766, 1e-07
    %v813 = vadd.f32 %v773, 1e-07
    %v814 = vadd.f32 %v780, 1e-07
    %v815 = vadd.f32 %v787, 1e-07
    %v816 = vadd.f32 %v794, 1e-07
    %v817 = vadd.f32 %v801, 1e-07
    %v818 = vrcp.pop %v802
    %v819 = vrcp.pop %v803
    %v820 = vrcp.pop %v804
    %v821 = vrcp.pop %v805
    %v822 = vrcp.pop %v806
    %v823 = vrcp.pop %v807
    %v824 = vrcp.pop %v808
    %v825 = vrcp.pop %v809
    %v826 = vrcp.pop %v810
    %v827 = vrcp.pop %v811
    %v828 = vrcp.pop %v812
    %v829 = vrcp.pop %v813
    %v830 = vrcp.pop %v814
    %v831 = vrcp.pop %v815
    %v832 = vrcp.pop %v816
    %v833 = vrcp.pop %v817
    %v834 = vmul.f32 %v532, %v818
    %v835 = vmul.f32 %v534, %v818
    %v836 = vmul.f32 %v536, %v819
    %v837 = vmul.f32 %v538, %v819
    %v838 = vmul.f32 %v542, %v820
    %v839 = vmul.f32 %v544, %v820
    %v840 = vmul.f32 %v546, %v821
    %v841 = vmul.f32 %v548, %v821
    %v842 = vmul.f32 %v552, %v822
    %v843 = vmul.f32 %v554, %v822
    %v844 = vmul.f32 %v556, %v823
    %v845 = vmul.f32 %v558, %v823
    %v846 = vmul.f32 %v562, %v824
    %v847 = vmul.f32 %v564, %v824
    %v848 = vmul.f32 %v566, %v825
    %v849 = vmul.f32 %v568, %v825
    %v850 = vmul.f32 %v572, %v826
    %v851 = vmul.f32 %v574, %v826
    %v852 = vmul.f32 %v576, %v827
    %v853 = vmul.f32 %v578, %v827
    %v854 = vmul.f32 %v582, %v828
    %v855 = vmul.f32 %v584, %v828
    %v856 = vmul.f32 %v586, %v829
    %v857 = vmul.f32 %v588, %v829
    %v858 = vmul.f32 %v592, %v830
    %v859 = vmul.f32 %v594, %v830
    %v860 = vmul.f32 %v596, %v831
    %v861 = vmul.f32 %v598, %v831
    %v862 = vmul.f32 %v602, %v832
    %v863 = vmul.f32 %v604, %v832
    %v864 = vmul.f32 %v606, %v833
    %v865 = vmul.f32 %v608, %v833
    %866 = vst [vmem:[#allocation2] sm:$0xff] %v834
    %867 = vst [vmem:[#allocation2 + $0x8] sm:$0xff] %v835
    %868 = vst [vmem:[#allocation2 + $0x10] sm:$0xff] %v836
    %869 = vst [vmem:[#allocation2 + $0x18] sm:$0xff] %v837
    %870 = vst [vmem:[#allocation2 + $0x20] sm:$0xff] %v838
    %871 = vst [vmem:[#allocation2 + $0x28] sm:$0xff] %v839
    %872 = vst [vmem:[#allocation2 + $0x30] sm:$0xff] %v840
    %873 = vst [vmem:[#allocation2 + $0x38] sm:$0xff] %v841
    %874 = vst [vmem:[#allocation2 + $0x40] sm:$0xff] %v842
    %875 = vst [vmem:[#allocation2 + $0x48] sm:$0xff] %v843
    %876 = vst [vmem:[#allocation2 + $0x50] sm:$0xff] %v844
    %877 = vst [vmem:[#allocation2 + $0x58] sm:$0xff] %v845
    %878 = vst [vmem:[#allocation2 + $0x60] sm:$0xff] %v846
    %879 = vst [vmem:[#allocation2 + $0x68] sm:$0xff] %v847
    %880 = vst [vmem:[#allocation2 + $0x70] sm:$0xff] %v848
    %881 = vst [vmem:[#allocation2 + $0x78] sm:$0xff] %v849
    %882 = vst [vmem:[#allocation2 + $0x80] sm:$0xff] %v850
    %883 = vst [vmem:[#allocation2 + $0x88] sm:$0xff] %v851
    %884 = vst [vmem:[#allocation2 + $0x90] sm:$0xff] %v852
    %885 = vst [vmem:[#allocation2 + $0x98] sm:$0xff] %v853
    %886 = vst [vmem:[#allocation2 + $0xa0] sm:$0xff] %v854
    %887 = vst [vmem:[#allocation2 + $0xa8] sm:$0xff] %v855
    %888 = vst [vmem:[#allocation2 + $0xb0] sm:$0xff] %v856
    %889 = vst [vmem:[#allocation2 + $0xb8] sm:$0xff] %v857
    %890 = vst [vmem:[#allocation2 + $0xc0] sm:$0xff] %v858
    %891 = vst [vmem:[#allocation2 + $0xc8] sm:$0xff] %v859
    %892 = vst [vmem:[#allocation2 + $0xd0] sm:$0xff] %v860
    %893 = vst [vmem:[#allocation2 + $0xd8] sm:$0xff] %v861
    %894 = vst [vmem:[#allocation2 + $0xe0] sm:$0xff] %v862
    %895 = vst [vmem:[#allocation2 + $0xe8] sm:$0xff] %v863
    %896 = vst [vmem:[#allocation2 + $0xf0] sm:$0xff] %v864
    %897 = vst [vmem:[#allocation2 + $0xf8] sm:$0xff] %v865
    // Predicated region
    $region22: #{_sample_and_project.1} parent=1 // pred_check
      _
    $region23: #{_sample_and_project.1} parent=1 // pred_check_branch
      %899 = sbr.rel (0) target = $region25
    $region24: #{_sample_and_project.1} parent=1 // pred_region
      %s901 = ssub.s32 4096, 4096
      %902 = vsyncadd [#allocation3], %s901
      %s903 = sshll.u32 [#allocation2], 4
      %s904 = int_to_ptr.vmem [resolvable:$true] %s903
      %909 = dma.vmem_to_hbm [thread:$0]  %s904, 4096, %s5, [#allocation3], 256, 256, 16
    $region25: #{_sample_and_project.1} parent=1 // pred_fallthru
      _
    // Predicated region
    $region26: #{_sample_and_project.1} parent=1 // pred_check
      _
    $region27: #{_sample_and_project.1} parent=1 // pred_check_branch
      %911 = sbr.rel (0) target = $region29
    $region28: #{_sample_and_project.1} parent=1 // pred_region
      %912 = dma.done [#allocation3], 4096
    $region29: #{_sample_and_project.1} parent=1 // pred_fallthru
      _
    %913 = vsyncpa [#allocation3], 1

</llo_original>
